<compile_context>
chip_gen: v7x
topology: tpu7x:2x2x1
jax: 0.10.0
libtpu: 0.0.40
codegen_flags: <defaults>
</compile_context>

<pallas_src>
import functools
import math

import jax
import jax.numpy as jnp
import numpy as np
from jax.experimental import pallas as pl
from jax.experimental.pallas import tpu as pltpu


# -----------------------------------------------------------------------------
# Capability probes (robust across jax versions / TPU generations).
# -----------------------------------------------------------------------------
@functools.lru_cache(maxsize=None)
def _supports_single_buffering():
    """True if pl.Buffered(1) (single-buffered constant operands) works."""
    try:
        def _probe(x_ref, o_ref):
            o_ref[...] = x_ref[...] + 1.0

        f = pl.pallas_call(
            _probe,
            out_shape=jax.ShapeDtypeStruct((8, 128), jnp.float32),
            grid=(2,),
            in_specs=[pl.BlockSpec((8, 128), lambda i: (0, 0),
                                   pipeline_mode=pl.Buffered(1))],
            out_specs=pl.BlockSpec((8, 128), lambda i: (0, 0)),
        )
        jax.block_until_ready(f(jnp.zeros((8, 128), jnp.float32)))
        return True
    except Exception:
        return False


@functools.lru_cache(maxsize=None)
def _vmem_limit_bytes():
    """~85% of physical VMEM (leaves headroom for Mosaic internal scratch)."""
    try:
        cap = int(pltpu.get_tpu_info().vmem_capacity_bytes)
    except Exception:
        cap = 64 * 1024 * 1024
    return int(cap * 0.85)


def _const_spec(shape):
    """Weight/bias spec: constant index map, single-buffered when supported."""
    idx = lambda b, si: (0,) * len(shape)
    if _supports_single_buffering():
        return pl.BlockSpec(shape, idx, pipeline_mode=pl.Buffered(1))
    return pl.BlockSpec(shape, idx)


def _pick_seq_tile(seq_len, seq_tile):
    ts = min(seq_tile, seq_len)
    while seq_len % ts != 0:
        ts -= 1
    return ts


# -----------------------------------------------------------------------------
# Kernel 1: fused QKV projection (computed once per layer, not per seq tile).
# -----------------------------------------------------------------------------
def qkv_proj_kernel(x_ref, w_ref, b_ref, o_ref):
    x = x_ref[0].astype(jnp.bfloat16)                               # (TS, D)
    y = jnp.dot(x, w_ref[...], preferred_element_type=jnp.float32) + b_ref[0]
    o_ref[0] = y.astype(jnp.bfloat16)                               # (TS, 3D)


def qkv_proj_pallas(x, w_qkv, b_qkv, *, seq_tile):
    B, S, D = x.shape
    D3 = w_qkv.shape[1]
    TS = _pick_seq_tile(S, seq_tile)

    cost = pl.CostEstimate(
        flops=2 * B * S * D * D3,
        transcendentals=0,
        bytes_accessed=4 * B * S * D + 2 * D * D3 + 4 * D3 + 2 * B * S * D3)

    return pl.pallas_call(
        qkv_proj_kernel,
        out_shape=jax.ShapeDtypeStruct((B, S, D3), jnp.bfloat16),
        grid_spec=pltpu.PrefetchScalarGridSpec(
            num_scalar_prefetch=0,
            grid=(B, S // TS),
            in_specs=[
                pl.BlockSpec((1, TS, D), lambda b, si: (b, si, 0)),
                _const_spec((D, D3)),
                _const_spec((1, D3)),
            ],
            out_specs=pl.BlockSpec((1, TS, D3), lambda b, si: (b, si, 0)),
        ),
        compiler_params=pltpu.CompilerParams(
            dimension_semantics=("parallel", "parallel"),
            vmem_limit_bytes=_vmem_limit_bytes(),
        ),
        cost_estimate=cost,
    )(x, w_qkv, b_qkv)


# -----------------------------------------------------------------------------
# Kernel 2: fused encoder layer (MHA core + residual + LN + FFN + residual + LN)
# Grid = (batch, seq_tiles); q is the per-tile query block, k/v are the full
# sequence for that batch element (head-major, bf16, precomputed by kernel 1).
# -----------------------------------------------------------------------------
def bert_layer_kernel(
    x_ref, q_ref, k_ref, v_ref,
    wo_ref, bo_ref,
    g1_ref, beta1_ref,
    w1_ref, bf1_ref, w2_ref, bf2_ref,
    g2_ref, beta2_ref,
    out_ref,
    *, num_heads, head_dim, eps,
):
    x_res = x_ref[0]                       # (TS, D) f32 residual stream
    q = q_ref[0]                           # (H, TS, dh) bf16
    k = k_ref[0]                           # (H, S,  dh) bf16
    v = v_ref[0]                           # (H, S,  dh) bf16
    scale = 1.0 / math.sqrt(head_dim)

    # ---- attention scores + softmax, batched over heads ----------------------
    s = jnp.einsum("hqd,hkd->hqk", q, k,
                   preferred_element_type=jnp.float32) * scale      # (H, TS, S)
    # TODO(synk): additive/boolean padding-mask support (mask=None path only).
    s = s - jnp.max(s, axis=-1, keepdims=True)
    p = jnp.exp(s)                                                   # f32 exp (v5e-safe)
    p = p * pl.reciprocal(jnp.sum(p, axis=-1, keepdims=True), approx=True)
    pv = jnp.einsum("hqk,hkd->hqd", p.astype(jnp.bfloat16), v,
                    preferred_element_type=jnp.float32)              # (H, TS, dh)

    # ---- output projection: per-head accumulation into full-width f32 --------
    # (no dh-wide masked stores, no attention scratch, no in-kernel transpose)
    acc = jnp.dot(pv[0].astype(jnp.bfloat16), wo_ref[0:head_dim, :],
                  preferred_element_type=jnp.float32)
    for h in range(1, num_heads):
        lo = h * head_dim
        acc = acc + jnp.dot(pv[h].astype(jnp.bfloat16),
                            wo_ref[lo:lo + head_dim, :],
                            preferred_element_type=jnp.float32)
    mha = acc + bo_ref[0]

    # ---- residual + layernorm 1 (f32) ----------------------------------------
    h1 = x_res + mha
    mu1 = jnp.mean(h1, axis=-1, keepdims=True)
    var1 = jnp.mean(jnp.square(h1 - mu1), axis=-1, keepdims=True)
    ln1 = (h1 - mu1) * jax.lax.rsqrt(var1 + eps) * g1_ref[0] + beta1_ref[0]

    # ---- position-wise feed-forward (Linear -> ReLU -> Linear) ---------------
    f = (jnp.dot(ln1.astype(jnp.bfloat16), w1_ref[...],
                 preferred_element_type=jnp.float32) + bf1_ref[0])
    f = jnp.maximum(f, 0.0)
    ffn = (jnp.dot(f.astype(jnp.bfloat16), w2_ref[...],
                   preferred_element_type=jnp.float32) + bf2_ref[0])
    # dropout_ffn is identity at inference.

    # ---- residual + layernorm 2 (f32) -----------------------------------------
    h2 = ln1 + ffn
    mu2 = jnp.mean(h2, axis=-1, keepdims=True)
    var2 = jnp.mean(jnp.square(h2 - mu2), axis=-1, keepdims=True)
    out_ref[0] = (h2 - mu2) * jax.lax.rsqrt(var2 + eps) * g2_ref[0] + beta2_ref[0]


def bert_layer_pallas(x, q, k, v, lp, *, num_heads, eps, seq_tile):
    """x: (B,S,D) f32; q/k/v: (B,H,S,dh) bf16; lp: per-layer params."""
    B, S, D = x.shape
    H = num_heads
    dh = D // H
    F = lp["w1"].shape[1]
    TS = _pick_seq_tile(S, seq_tile)

    in_specs = [
        pl.BlockSpec((1, TS, D), lambda b, si: (b, si, 0)),          # x (residual)
        pl.BlockSpec((1, H, TS, dh), lambda b, si: (b, 0, si, 0)),   # q (query tile)
        pl.BlockSpec((1, H, S, dh), lambda b, si: (b, 0, 0, 0)),     # k (full seq)
        pl.BlockSpec((1, H, S, dh), lambda b, si: (b, 0, 0, 0)),     # v (full seq)
        _const_spec((D, D)), _const_spec((1, D)),                    # wo, bo
        _const_spec((1, D)), _const_spec((1, D)),                    # ln1 gamma, beta
        _const_spec((D, F)), _const_spec((1, F)),                    # ffn w1, b1
        _const_spec((F, D)), _const_spec((1, D)),                    # ffn w2, b2
        _const_spec((1, D)), _const_spec((1, D)),                    # ln2 gamma, beta
    ]

    flops = (4 * B * H * S * S * dh        # QK^T + P@V
             + 2 * B * S * D * D           # output projection
             + 4 * B * S * D * F)          # FFN
    transcendentals = B * H * S * S + 4 * B * S
    bytes_accessed = (2 * (D * D + 2 * D * F)      # bf16 weights
                      + 4 * (7 * D + F)            # f32 biases / LN params
                      + 4 * 2 * B * S * D          # x in + out (f32)
                      + 2 * 3 * B * S * D)         # q, k, v (bf16)
    cost = pl.CostEstimate(flops=flops, transcendentals=transcendentals,
                           bytes_accessed=bytes_accessed)

    kernel = functools.partial(bert_layer_kernel, num_heads=H, head_dim=dh, eps=eps)
    return pl.pallas_call(
        kernel,
        out_shape=jax.ShapeDtypeStruct((B, S, D), jnp.float32),
        grid_spec=pltpu.PrefetchScalarGridSpec(
            num_scalar_prefetch=0,
            grid=(B, S // TS),
            in_specs=in_specs,
            out_specs=pl.BlockSpec((1, TS, D), lambda b, si: (b, si, 0)),
        ),
        compiler_params=pltpu.CompilerParams(
            dimension_semantics=("parallel", "parallel"),
            vmem_limit_bytes=_vmem_limit_bytes(),
        ),
        cost_estimate=cost,
    )(
        x, q, k, v,
        lp["wo"], lp["bo"],
        lp["g1"], lp["beta1"],
        lp["w1"], lp["bf1"], lp["w2"], lp["bf2"],
        lp["g2"], lp["beta2"],
    )


# -----------------------------------------------------------------------------
# Parameter init + full-model forward (embedding / head-split glue in plain JAX)
# -----------------------------------------------------------------------------
def init_params(key, *, num_layers, num_heads, d_model, ff_dim, vocab, max_pos):
    keys = jax.random.split(key, 3 + num_layers)
    std = 0.02
    params = {
        "tok_emb": jax.random.normal(keys[0], (vocab, d_model), jnp.float32) * std,
        "pos_emb": jax.random.normal(keys[1], (max_pos, d_model), jnp.float32) * std,
        "seg_emb": jax.random.normal(keys[2], (2, d_model), jnp.float32) * std,
        "layers": [],
    }
    D, F = d_model, ff_dim
    for li in range(num_layers):
        ks = jax.random.split(keys[3 + li], 12)
        wq = jax.random.normal(ks[0], (D, D), jnp.float32) * std
        wk = jax.random.normal(ks[1], (D, D), jnp.float32) * std
        wv = jax.random.normal(ks[2], (D, D), jnp.float32) * std
        lp = {
            # fused QKV projection weight (D, 3D), bf16
            "wqkv": jnp.concatenate([wq, wk, wv], axis=1).astype(jnp.bfloat16),
            "bqkv": jax.random.normal(ks[6], (1, 3 * D), jnp.float32) * std,
            "wo": (jax.random.normal(ks[3], (D, D), jnp.float32) * std
                   ).astype(jnp.bfloat16),
            "bo": jax.random.normal(ks[7], (1, D), jnp.float32) * std,
            "g1": jnp.ones((1, D), jnp.float32),
            "beta1": jnp.zeros((1, D), jnp.float32),
            "w1": (jax.random.normal(ks[4], (D, F), jnp.float32) * std
                   ).astype(jnp.bfloat16),
            "bf1": jax.random.normal(ks[8], (1, F), jnp.float32) * std,
            "w2": (jax.random.normal(ks[5], (F, D), jnp.float32) * std
                   ).astype(jnp.bfloat16),
            "bf2": jax.random.normal(ks[9], (1, D), jnp.float32) * std,
            "g2": jnp.ones((1, D), jnp.float32),
            "beta2": jnp.zeros((1, D), jnp.float32),
        }
        params["layers"].append(lp)
    return params


def bert_forward(x_ids, x_seg, params, *, num_heads, eps, seq_tile=256):
    B, S = x_ids.shape
    # JointBERTEmbedding: token + segment + learned position embeddings.
    emb = (params["tok_emb"][x_ids]
           + params["seg_emb"][x_seg]
           + params["pos_emb"][:S][None, :, :])
    h = emb.astype(jnp.float32)     # top-level dropout is identity at inference
    D = h.shape[-1]
    H = num_heads
    dh = D // H

    def split_heads(t):             # (B,S,D) -> (B,H,S,dh): cheap XLA layout glue
        return t.reshape(B, S, H, dh).transpose(0, 2, 1, 3)

    for lp in params["layers"]:
        qkv = qkv_proj_pallas(h, lp["wqkv"], lp["bqkv"], seq_tile=seq_tile)
        q, k, v = jnp.split(qkv, 3, axis=-1)
        h = bert_layer_pallas(h, split_heads(q), split_heads(k), split_heads(v),
                              lp, num_heads=H, eps=eps, seq_tile=seq_tile)
    return h


# -----------------------------------------------------------------------------
# Pure-JAX f32 reference (PyTorch semantics, bf16-rounded weights cast to f32).
# -----------------------------------------------------------------------------
def bert_forward_ref(x_ids, x_seg, params, *, num_heads, eps):
    B, S = x_ids.shape
    h = (params["tok_emb"][x_ids]
         + params["seg_emb"][x_seg]
         + params["pos_emb"][:S][None, :, :]).astype(jnp.float32)
    for lp in params["layers"]:
        D = h.shape[-1]
        dh = D // num_heads
        wqkv = lp["wqkv"].astype(jnp.float32)
        wq, wk, wv = wqkv[:, :D], wqkv[:, D:2 * D], wqkv[:, 2 * D:]
        bqkv = lp["bqkv"].astype(jnp.float32)[0]
        bq, bk, bv = bqkv[:D], bqkv[D:2 * D], bqkv[2 * D:]
        wo = lp["wo"].astype(jnp.float32)
        w1 = lp["w1"].astype(jnp.float32)
        w2 = lp["w2"].astype(jnp.float32)
        bo = lp["bo"][0]
        bf1 = lp["bf1"][0]
        bf2 = lp["bf2"][0]

        q = h @ wq + bq
        k = h @ wk + bk
        v = h @ wv + bv
        qh = q.reshape(B, S, num_heads, dh).transpose(0, 2, 1, 3)
        kh = k.reshape(B, S, num_heads, dh).transpose(0, 2, 1, 3)
        vh = v.reshape(B, S, num_heads, dh).transpose(0, 2, 1, 3)
        s = jnp.einsum("bhqd,bhkd->bhqk", qh, kh) / math.sqrt(dh)
        p = jax.nn.softmax(s, axis=-1)
        a = jnp.einsum("bhqk,bhkd->bhqd", p, vh).transpose(0, 2, 1, 3).reshape(B, S, D)
        mha = a @ wo + bo

        def ln(z, g, b):
            mu = jnp.mean(z, -1, keepdims=True)
            var = jnp.mean(jnp.square(z - mu), -1, keepdims=True)
            return (z - mu) * jax.lax.rsqrt(var + eps) * g[0] + b[0]

        ln1 = ln(h + mha, lp["g1"], lp["beta1"])
        f = jnp.maximum(ln1 @ w1 + bf1, 0.0)
        ffn = f @ w2 + bf2
        h = ln(ln1 + ffn, lp["g2"], lp["beta2"])
    return h


if __name__ == "__main__":
    # Small config consistent with the module's forward.
    num_layers = 2
    num_heads = 4
    d_model = 32
    ff_dim = 64
    vocab = 100
    max_pos = 16
    eps = 1e-6
    B, S = 2, 8

    key = jax.random.PRNGKey(0)
    kp, kx, ks = jax.random.split(key, 3)
    params = init_params(kp, num_layers=num_layers, num_heads=num_heads,
                         d_model=d_model, ff_dim=ff_dim, vocab=vocab,
                         max_pos=max_pos)
    x_ids = jax.random.randint(kx, (B, S), 0, vocab, dtype=jnp.int32)
    x_seg = jax.random.randint(ks, (B, S), 0, 2, dtype=jnp.int32)

    out = bert_forward(x_ids, x_seg, params, num_heads=num_heads, eps=eps,
                       seq_tile=256)
    out = jax.block_until_ready(out)

    ref = bert_forward_ref(x_ids, x_seg, params, num_heads=num_heads, eps=eps)
    assert out.shape == (B, S, d_model)
    np.testing.assert_allclose(np.asarray(out), np.asarray(ref),
                               rtol=3e-2, atol=3e-2)
    print("KERNEL_OK")
</pallas_src>

<mosaic_0001>
module attributes {stable_mosaic.version = 11 : i64} {
  func.func @_probe(%arg0: i32, %arg1: memref<8x128xf32, #tpu.memory_space<vmem>>, %arg2: memref<8x128xf32, #tpu.memory_space<vmem>>) attributes {dimension_semantics = [#tpu.dimension_semantics<arbitrary>], iteration_bounds = array<i64: 2>, scalar_prefetch = 0 : i64, scratch_operands = 0 : i64, tpu.core_type = #tpu.core_type<tc>, window_params = [{pipeline_mode = #tpu.pipeline_mode<synchronous>, transform_indices = @transform_0, window_bounds = array<i64: 8, 128>}, {pipeline_mode = #tpu.pipeline_mode<synchronous>, transform_indices = @transform_1, window_bounds = array<i64: 8, 128>}]} {
    %c0 = arith.constant 0 : index
    %c0_0 = arith.constant 0 : index
    %0 = vector.load %arg1[%c0, %c0_0] : memref<8x128xf32, #tpu.memory_space<vmem>>, vector<8x128xf32>
    %cst = arith.constant 1.000000e+00 : f32
    %1 = vector.broadcast %cst : f32 to vector<8x128xf32>
    %2 = arith.addf %0, %1 : vector<8x128xf32>
    %c0_1 = arith.constant 0 : index
    %c0_2 = arith.constant 0 : index
    %3 = vector.load %arg2[%c0_1, %c0_2] : memref<8x128xf32, #tpu.memory_space<vmem>>, vector<8x128xf32>
    tpu.vector_store %arg2[%c0_1, %c0_2], %2 {strides = array<i32>} : memref<8x128xf32, #tpu.memory_space<vmem>>, vector<8x128xf32>,
    return
  }
  func.func @transform_0(%arg0: i32) -> (i32, i32) {
    %c0_i32 = arith.constant 0 : i32
    %c0_i32_0 = arith.constant 0 : i32
    %c0_i32_1 = arith.constant 0 : i32
    return %c0_i32, %c0_i32_0 : i32, i32
  }
  func.func @transform_1(%arg0: i32) -> (i32, i32) {
    %c0_i32 = arith.constant 0 : i32
    %c0_i32_0 = arith.constant 0 : i32
    %c0_i32_1 = arith.constant 0 : i32
    return %c0_i32, %c0_i32_0 : i32, i32
  }
}

module attributes {stable_mosaic.version = 11 : i64} {
  func.func @qkv_proj_kernel(%arg0: i32, %arg1: i32, %arg2: memref<1x8x32xf32, #tpu.memory_space<vmem>>, %arg3: memref<32x96xbf16, #tpu.memory_space<vmem>>, %arg4: memref<1x96xf32, #tpu.memory_space<vmem>>, %arg5: memref<1x8x96xbf16, #tpu.memory_space<vmem>>) attributes {dimension_semantics = [#tpu.dimension_semantics<parallel>, #tpu.dimension_semantics<parallel>], iteration_bounds = array<i64: 2, 1>, scalar_prefetch = 0 : i64, scratch_operands = 0 : i64, tpu.core_type = #tpu.core_type<tc>, window_params = [{transform_indices = @transform_0, window_bounds = array<i64: 1, 8, 32>}, {pipeline_mode = #tpu.pipeline_mode<synchronous>, transform_indices = @transform_1, window_bounds = array<i64: 32, 96>}, {pipeline_mode = #tpu.pipeline_mode<synchronous>, transform_indices = @transform_2, window_bounds = array<i64: 1, 96>}, {transform_indices = @transform_3, window_bounds = array<i64: 1, 8, 96>}]} {
    %c0 = arith.constant 0 : index
    %c0_0 = arith.constant 0 : index
    %c0_1 = arith.constant 0 : index
    %0 = vector.load %arg2[%c0, %c0_0, %c0_1] : memref<1x8x32xf32, #tpu.memory_space<vmem>>, vector<1x8x32xf32>
    %1 = vector.shape_cast %0 : vector<1x8x32xf32> to vector<8x32xf32>
    %2 = arith.truncf %1 : vector<8x32xf32> to vector<8x32xbf16>
    %c0_2 = arith.constant 0 : index
    %c0_3 = arith.constant 0 : index
    %3 = vector.load %arg3[%c0_2, %c0_3] : memref<32x96xbf16, #tpu.memory_space<vmem>>, vector<32x96xbf16>
    %cst = arith.constant dense<0.000000e+00> : vector<8x96xf32>
    %4 = tpu.matmul %2, %3, %cst {dimension_numbers = #tpu.dot_dimension_numbers<[1], [0], [0], [1], [0, 0, 1, 1], [], []>} : vector<8x32xbf16>, vector<32x96xbf16>, vector<8x96xf32> -> vector<8x96xf32>
    %c0_4 = arith.constant 0 : index
    %c0_5 = arith.constant 0 : index
    %5 = vector.load %arg4[%c0_4, %c0_5] : memref<1x96xf32, #tpu.memory_space<vmem>>, vector<1x96xf32>
    %6 = vector.shape_cast %5 : vector<1x96xf32> to vector<96xf32>
    %7 = vector.shape_cast %6 : vector<96xf32> to vector<1x96xf32>
    %8 = vector.broadcast %7 : vector<1x96xf32> to vector<8x96xf32>
    %9 = arith.addf %4, %8 : vector<8x96xf32>
    %10 = arith.truncf %9 : vector<8x96xf32> to vector<8x96xbf16>
    %c0_6 = arith.constant 0 : index
    %c0_7 = arith.constant 0 : index
    %c0_8 = arith.constant 0 : index
    %11 = vector.load %arg5[%c0_6, %c0_7, %c0_8] : memref<1x8x96xbf16, #tpu.memory_space<vmem>>, vector<1x8x96xbf16>
    %12 = vector.shape_cast %11 : vector<1x8x96xbf16> to vector<8x96xbf16>
    %13 = vector.shape_cast %10 : vector<8x96xbf16> to vector<1x8x96xbf16>
    tpu.vector_store %arg5[%c0_6, %c0_7, %c0_8], %13 {strides = array<i32>} : memref<1x8x96xbf16, #tpu.memory_space<vmem>>, vector<1x8x96xbf16>,
    return
  }
  func.func @transform_0(%arg0: i32, %arg1: i32) -> (i32, i32, i32) {
    %c0_i32 = arith.constant 0 : i32
    %c0_i32_0 = arith.constant 0 : i32
    return %arg0, %arg1, %c0_i32 : i32, i32, i32
  }
  func.func @transform_1(%arg0: i32, %arg1: i32) -> (i32, i32) {
    %c0_i32 = arith.constant 0 : i32
    %c0_i32_0 = arith.constant 0 : i32
    %c0_i32_1 = arith.constant 0 : i32
    return %c0_i32, %c0_i32_0 : i32, i32
  }
  func.func @transform_2(%arg0: i32, %arg1: i32) -> (i32, i32) {
    %c0_i32 = arith.constant 0 : i32
    %c0_i32_0 = arith.constant 0 : i32
    %c0_i32_1 = arith.constant 0 : i32
    return %c0_i32, %c0_i32_0 : i32, i32
  }
  func.func @transform_3(%arg0: i32, %arg1: i32) -> (i32, i32, i32) {
    %c0_i32 = arith.constant 0 : i32
    %c0_i32_0 = arith.constant 0 : i32
    return %arg0, %arg1, %c0_i32 : i32, i32, i32
  }
}

</mosaic_0001>

<llo_original>
// kernel: tpu_custom_call.1
$region0: #{tpu_custom_call.1}
  #allocation0 [shape = 'u32[]', space=smem, size = 0x4, offset = 0x4, fixed_abs, tag = 'smem constant byte address 0x4 - core index']
  #allocation1 [shape = 'u32[144,128]{1,0:T(1,128)}', space=vmem, size = 0x12000, scoped, tag = 'internal scratch']
  %s0 = inlined_call_operand.hbm [shape: f32[8,128], index: 0, kind: input, shape index: {}]
  %s1 = inlined_call_operand.hbm [shape: f32[8,128], index: 1, kind: output, shape index: {}]
  %s2 = sld [smem:[#allocation0]]
  $region41: #{tpu_custom_call.1} parent=0
    _
  %s4 = ssub.s32 1, %s2
  %s5 = scalar_select 0, %s4, %s2
  $region1: #{tpu_custom_call.1} parent=0
    #allocation2 [shape = 'u8[4096]{0}', space=vmem, size = 0x1000, scoped, tag = 'input window, operand 0, single buffered']
    #allocation3 [shape = 's32[2]{0}', space=sflag, size = 0x8, scoped, tag = 'scoped memory for tpu_custom_call.1']
    #allocation4 [shape = 's32[2]{0}', space=sflag, size = 0x8, scoped, tag = 'scoped memory for tpu_custom_call.1']
    #allocation5 [shape = 'u8[4096]{0}', space=vmem, size = 0x1000, scoped, tag = 'output window, operand 0, single buffered']
    %6 = vsyncpa [#allocation3], 0
    %7 = vsyncpa [#allocation4], 0
    loop: start=0, step=1, limit=4
    $region2: #{tpu_custom_call.1} parent=1 // loop_pre_header
      _
    $region3: #{tpu_custom_call.1} parent=1 // loop_header
      %s9 = sphi 0, %s13
      %p10 = scmp.ge.s32.totalorder %s9, 4
      %s17 = sphi 0, %s17
      %s19 = sphi 0, %s17
      %s20 = sphi 0, %s19
      %s34 = sphi 0, %s20
      %s38 = sphi 0, %s38
      %s40 = sphi 0, %s38
      %s41 = sphi 0, %s40
      %s55 = sphi 0, %s41
    $region4: #{tpu_custom_call.1} parent=1 // loop_header_branch
      %12 = sbr.rel (%p10) target = $region8
    $region5: #{tpu_custom_call.1} parent=1 // loop_body
      %s14 = ssub.s32 %s9, 1
      %s15 = ssub.s32 %s9, 2
      %s16 = sadd.s32 %s9, 1
      %s18 = sadd.s32 %s17, 1
      %p21 = scmp.eq.s32.totalorder %s9, 1
      %p22 = scmp.ne.s32.totalorder %s17, %s19
      %p23 = scmp.eq.s32.totalorder %s9, 0
      %p24 = por %p22, %p23
      %p25 = scmp.ne.s32.totalorder %s17, %s19
      %p26 = scmp.eq.s32.totalorder %s14, 1
      %p27 = por %p25, %p26
      %p28 = scmp.ne.s32.totalorder %s19, %s20
      %p29 = scmp.eq.s32.totalorder %s14, 0
      %p30 = por %p28, %p29
      %p31 = scmp.ne.s32.totalorder %s19, %s20
      %p32 = scmp.eq.s32.totalorder %s15, 1
      %p33 = por %p31, %p32
      %p35 = scmp.ne.s32.totalorder %s20, %s34
      %p36 = scmp.eq.s32.totalorder %s15, 0
      %p37 = por %p35, %p36
      %s39 = sadd.s32 %s38, 1
      %p42 = scmp.eq.s32.totalorder %s9, 1
      %p43 = scmp.ne.s32.totalorder %s38, %s40
      %p44 = scmp.eq.s32.totalorder %s9, 0
      %p45 = por %p43, %p44
      %p46 = scmp.ne.s32.totalorder %s38, %s40
      %p47 = scmp.eq.s32.totalorder %s14, 1
      %p48 = por %p46, %p47
      %p49 = scmp.ne.s32.totalorder %s40, %s41
      %p50 = scmp.eq.s32.totalorder %s14, 0
      %p51 = por %p49, %p50
      %p52 = scmp.ne.s32.totalorder %s40, %s41
      %p53 = scmp.eq.s32.totalorder %s15, 1
      %p54 = por %p52, %p53
      %p56 = scmp.ne.s32.totalorder %s41, %s55
      %p57 = scmp.eq.s32.totalorder %s15, 0
      %p58 = por %p56, %p57
      %p59 = scmp.le.s32.totalorder 1, %s9
      %p60 = scmp.lt.s32.totalorder %s9, 3
      %p61 = pnand %p59, %p60
      %p62 = pneg %p61
      // Predicated region
      $region9: #{tpu_custom_call.1} parent=5 // pred_check
        _
      $region10: #{tpu_custom_call.1} parent=5 // pred_check_branch
        %64 = sbr.rel (%p61) target = $region12
      $region11: #{tpu_custom_call.1} parent=5 // pred_region
        %s65 = ssub.s32 %s9, 1
        // Predicated region
        $region13: #{tpu_custom_call.1} parent=11 // pred_check
          %p66 = pneg %p30
        $region14: #{tpu_custom_call.1} parent=11 // pred_check_branch
          %68 = sbr.rel (%p66) target = $region16
        $region15: #{tpu_custom_call.1} parent=11 // pred_region
          %s70 = ssub.s32 128, 128
          %71 = vsyncadd [#allocation3], %s70
          %s73 = sshll.u32 [#allocation2], 4
          %s74 = int_to_ptr.vmem [resolvable:$true] %s73
          %76 = dma.hbm_to_vmem [thread:$0]  %s0, 128, %s74, [#allocation3]
        $region16: #{tpu_custom_call.1} parent=11 // pred_fallthru
          _
      $region12: #{tpu_custom_call.1} parent=5 // pred_fallthru
        _
      %p77 = scmp.lt.s32.totalorder %s9, 2
      // Predicated region
      $region17: #{tpu_custom_call.1} parent=5 // pred_check
        %p78 = pneg %p77
      $region18: #{tpu_custom_call.1} parent=5 // pred_check_branch
        %80 = sbr.rel (%p78) target = $region20
      $region19: #{tpu_custom_call.1} parent=5 // pred_region
        _
      $region20: #{tpu_custom_call.1} parent=5 // pred_fallthru
        _
      %p81 = scmp.le.s32.totalorder 1, %s9
      %p82 = scmp.lt.s32.totalorder %s9, 3
      %p83 = pnand %p81, %p82
      %p84 = pneg %p83
      // Predicated region
      $region21: #{tpu_custom_call.1} parent=5 // pred_check
        _
      $region22: #{tpu_custom_call.1} parent=5 // pred_check_branch
        %86 = sbr.rel (%p83) target = $region24
      $region23: #{tpu_custom_call.1} parent=5 // pred_region
        %s87 = ssub.s32 %s9, 1
        // Predicated region
        $region25: #{tpu_custom_call.1} parent=23 // pred_check
          %p88 = pneg %p30
        $region26: #{tpu_custom_call.1} parent=23 // pred_check_branch
          %90 = sbr.rel (%p88) target = $region28
        $region27: #{tpu_custom_call.1} parent=23 // pred_region
          %91 = dma.done [#allocation3], 128
        $region28: #{tpu_custom_call.1} parent=23 // pred_fallthru
          _
        %p92 = pneg %p30
        %p93 = pneg %p27
        %p94 = pneg %p51
        %p95 = pneg %p48
        %v96 = vld [vmem:[#allocation2] sm:$0xff]
        %v97 = vadd.f32 %v96, 1.0
        %98 = vst [vmem:[#allocation5] sm:$0xff] %v97
        // Predicated region
        $region29: #{tpu_custom_call.1} parent=23 // pred_check
          %p99 = pneg %p48
        $region30: #{tpu_custom_call.1} parent=23 // pred_check_branch
          %101 = sbr.rel (%p99) target = $region32
        $region31: #{tpu_custom_call.1} parent=23 // pred_region
          %s103 = ssub.s32 128, 128
          %104 = vsyncadd [#allocation4], %s103
          %s106 = sshll.u32 [#allocation5], 4
          %s107 = int_to_ptr.vmem [resolvable:$true] %s106
          %109 = dma.vmem_to_hbm [thread:$0]  %s107, 128, %s1, [#allocation4]
        $region32: #{tpu_custom_call.1} parent=23 // pred_fallthru
          _
        // Predicated region
        $region33: #{tpu_custom_call.1} parent=23 // pred_check
          %p110 = pneg %p48
        $region34: #{tpu_custom_call.1} parent=23 // pred_check_branch
          %112 = sbr.rel (%p110) target = $region36
        $region35: #{tpu_custom_call.1} parent=23 // pred_region
          %113 = dma.done [#allocation4], 128
        $region36: #{tpu_custom_call.1} parent=23 // pred_fallthru
          _
      $region24: #{tpu_custom_call.1} parent=5 // pred_fallthru
        _
      %p114 = scmp.le.s32.totalorder 2, %s9
      // Predicated region
      $region37: #{tpu_custom_call.1} parent=5 // pred_check
        %p115 = pneg %p114
      $region38: #{tpu_custom_call.1} parent=5 // pred_check_branch
        %117 = sbr.rel (%p115) target = $region40
      $region39: #{tpu_custom_call.1} parent=5 // pred_region
        %s118 = ssub.s32 %s9, 2
      $region40: #{tpu_custom_call.1} parent=5 // pred_fallthru
        _
    $region6: #{tpu_custom_call.1} parent=1 // loop_footer
      %s13 = sadd.s32 1, %s9
    $region7: #{tpu_custom_call.1} parent=1 // loop_footer_branch
      %8 = sbr.rel target = $region3
    $region8: #{tpu_custom_call.1} parent=1 // loop_exit
      _
    %119 = vsyncpa [#allocation3], 1
    %s120 = scalar_lea.sflag [#allocation3], 1
    %121 = vsyncpa %s120, 1
    %122 = vsyncpa [#allocation4], 1
    %s123 = scalar_lea.sflag [#allocation4], 1
    %124 = vsyncpa %s123, 1

// kernel: tpu_custom_call.1
$region0: #{tpu_custom_call.1}
  #allocation0 [shape = 'u32[]', space=smem, size = 0x4, offset = 0x4, fixed_abs, tag = 'smem constant byte address 0x4 - core index']
  #allocation1 [shape = 'u32[144,128]{1,0:T(1,128)}', space=vmem, size = 0x12000, scoped, tag = 'internal scratch']
  %s0 = inlined_call_operand.hbm [shape: f32[2,8,32], index: 0, kind: input, shape index: {}]
  %s1 = inlined_call_operand.hbm [shape: bf16[32,96], index: 1, kind: input, shape index: {}]
  %s2 = inlined_call_operand.vmem [shape: f32[1,96], index: 2, kind: input, shape index: {}]
  %s3 = inlined_call_operand.hbm [shape: bf16[2,8,96], index: 3, kind: output, shape index: {}]
  %s4 = sld [smem:[#allocation0]]
  $region53: #{tpu_custom_call.1} parent=0
    _
  %s6 = ssub.s32 1, %s4
  %s7 = scalar_select 0, %s6, %s4
  $region1: #{tpu_custom_call.1} parent=0
    #allocation2 [shape = 'u8[8192]{0}', space=vmem, size = 0x2000, scoped, tag = 'input window, operand 0']
    #allocation3 [shape = 's32[2]{0}', space=sflag, size = 0x8, scoped, tag = 'scoped memory for tpu_custom_call.1']
    #allocation4 [shape = 's32[2]{0}', space=sflag, size = 0x8, scoped, tag = 'scoped memory for tpu_custom_call.1']
    #allocation5 [shape = 'u8[8192]{0}', space=vmem, size = 0x2000, scoped, tag = 'input window, operand 1, single buffered']
    #allocation6 [shape = 's32[1]{0}', space=sflag, size = 0x4, scoped, tag = 'scoped memory for tpu_custom_call.1']
    #allocation7 [shape = 'u8[4096]{0}', space=vmem, size = 0x1000, scoped, tag = 'output window, operand 0']
    %8 = vsyncpa [#allocation3], 0
    %s9 = scalar_lea.sflag [#allocation3], 1
    %10 = vsyncpa %s9, 0
    %11 = vsyncpa [#allocation6], 0
    %12 = vsyncpa [#allocation4], 0
    %s13 = scalar_lea.sflag [#allocation4], 1
    %14 = vsyncpa %s13, 0
    loop: start=0, step=1, limit=4
    $region2: #{tpu_custom_call.1} parent=1 // loop_pre_header
      _
    $region3: #{tpu_custom_call.1} parent=1 // loop_header
      %s16 = sphi 0, %s20
      %p17 = scmp.ge.s32.totalorder %s16, 4
      %s23 = sphi 0, %s35
      %s24 = sphi 0, %s31
      %s25 = sphi 0, %s23
      %s26 = sphi 0, %s24
      %s27 = sphi 0, %s25
      %s28 = sphi 0, %s26
      %s40 = sphi 0, %s42
      %s43 = sphi 0, %s40
      %s44 = sphi 0, %s43
      %s60 = sphi 0, %s44
      %s64 = sphi 0, %s64
      %s66 = sphi 0, %s64
      %s67 = sphi 0, %s66
      %s81 = sphi 0, %s67
      %s85 = sphi 0, %s85
      %s87 = sphi 0, %s85
      %s88 = sphi 0, %s87
      %s102 = sphi 0, %s88
      %s110 = sphi 0, %s112
      %s113 = sphi 0, %s110
      %s114 = sphi 0, %s113
      %s130 = sphi 0, %s114
    $region4: #{tpu_custom_call.1} parent=1 // loop_header_branch
      %19 = sbr.rel (%p17) target = $region8
    $region5: #{tpu_custom_call.1} parent=1 // loop_body
      %s21 = ssub.s32 %s16, 1
      %s22 = ssub.s32 %s16, 2
      %s29 = sadd.s32 1, %s24
      %p30 = scmp.ge.s32.totalorder %s29, 1
      %s31 = scalar_select %p30, 0, %s29
      %s32 = sadd.s32 1, %s23
      %s33 = scalar_select %p30, %s32, %s23
      %p34 = scmp.ge.s32.totalorder %s33, 2
      %s35 = scalar_select %p34, 0, %s33
      %s36 = ssub.s32 %s23, %s35
      %s37 = ssub.s32 %s24, %s31
      %s38 = sor.u32 %s36, %s37
      %p39 = scmp.eq.s32.totalorder %s38, 0
      %s41 = sadd.s32 %s40, 1
      %s42 = scalar_select %p39, %s40, %s41
      %p45 = pneg %p39
      %p46 = scmp.eq.s32.totalorder %s16, 1
      %p47 = por %p45, %p46
      %p48 = scmp.ne.s32.totalorder %s40, %s43
      %p49 = scmp.eq.s32.totalorder %s16, 0
      %p50 = por %p48, %p49
      %p51 = scmp.ne.s32.totalorder %s40, %s43
      %p52 = scmp.eq.s32.totalorder %s21, 1
      %p53 = por %p51, %p52
      %p54 = scmp.ne.s32.totalorder %s43, %s44
      %p55 = scmp.eq.s32.totalorder %s21, 0
      %p56 = por %p54, %p55
      %p57 = scmp.ne.s32.totalorder %s43, %s44
      %p58 = scmp.eq.s32.totalorder %s22, 1
      %p59 = por %p57, %p58
      %p61 = scmp.ne.s32.totalorder %s44, %s60
      %p62 = scmp.eq.s32.totalorder %s22, 0
      %p63 = por %p61, %p62
      %s65 = sadd.s32 %s64, 1
      %p68 = scmp.eq.s32.totalorder %s16, 1
      %p69 = scmp.ne.s32.totalorder %s64, %s66
      %p70 = scmp.eq.s32.totalorder %s16, 0
      %p71 = por %p69, %p70
      %p72 = scmp.ne.s32.totalorder %s64, %s66
      %p73 = scmp.eq.s32.totalorder %s21, 1
      %p74 = por %p72, %p73
      %p75 = scmp.ne.s32.totalorder %s66, %s67
      %p76 = scmp.eq.s32.totalorder %s21, 0
      %p77 = por %p75, %p76
      %p78 = scmp.ne.s32.totalorder %s66, %s67
      %p79 = scmp.eq.s32.totalorder %s22, 1
      %p80 = por %p78, %p79
      %p82 = scmp.ne.s32.totalorder %s67, %s81
      %p83 = scmp.eq.s32.totalorder %s22, 0
      %p84 = por %p82, %p83
      %s86 = sadd.s32 %s85, 1
      %p89 = scmp.eq.s32.totalorder %s16, 1
      %p90 = scmp.ne.s32.totalorder %s85, %s87
      %p91 = scmp.eq.s32.totalorder %s16, 0
      %p92 = por %p90, %p91
      %p93 = scmp.ne.s32.totalorder %s85, %s87
      %p94 = scmp.eq.s32.totalorder %s21, 1
      %p95 = por %p93, %p94
      %p96 = scmp.ne.s32.totalorder %s87, %s88
      %p97 = scmp.eq.s32.totalorder %s21, 0
      %p98 = por %p96, %p97
      %p99 = scmp.ne.s32.totalorder %s87, %s88
      %p100 = scmp.eq.s32.totalorder %s22, 1
      %p101 = por %p99, %p100
      %p103 = scmp.ne.s32.totalorder %s88, %s102
      %p104 = scmp.eq.s32.totalorder %s22, 0
      %p105 = por %p103, %p104
      %s106 = ssub.s32 %s23, %s35
      %s107 = ssub.s32 %s24, %s31
      %s108 = sor.u32 %s106, %s107
      %p109 = scmp.eq.s32.totalorder %s108, 0
      %s111 = sadd.s32 %s110, 1
      %s112 = scalar_select %p109, %s110, %s111
      %p115 = pneg %p109
      %p116 = scmp.eq.s32.totalorder %s16, 1
      %p117 = por %p115, %p116
      %p118 = scmp.ne.s32.totalorder %s110, %s113
      %p119 = scmp.eq.s32.totalorder %s16, 0
      %p120 = por %p118, %p119
      %p121 = scmp.ne.s32.totalorder %s110, %s113
      %p122 = scmp.eq.s32.totalorder %s21, 1
      %p123 = por %p121, %p122
      %p124 = scmp.ne.s32.totalorder %s113, %s114
      %p125 = scmp.eq.s32.totalorder %s21, 0
      %p126 = por %p124, %p125
      %p127 = scmp.ne.s32.totalorder %s113, %s114
      %p128 = scmp.eq.s32.totalorder %s22, 1
      %p129 = por %p127, %p128
      %p131 = scmp.ne.s32.totalorder %s114, %s130
      %p132 = scmp.eq.s32.totalorder %s22, 0
      %p133 = por %p131, %p132
      %p134 = scmp.le.s32.totalorder 1, %s16
      %p135 = scmp.lt.s32.totalorder %s16, 3
      %p136 = pnand %p134, %p135
      %p137 = pneg %p136
      // Predicated region
      $region9: #{tpu_custom_call.1} parent=5 // pred_check
        _
      $region10: #{tpu_custom_call.1} parent=5 // pred_check_branch
        %139 = sbr.rel (%p136) target = $region12
      $region11: #{tpu_custom_call.1} parent=5 // pred_region
        %s140 = ssub.s32 %s16, 1
        // Predicated region
        $region13: #{tpu_custom_call.1} parent=11 // pred_check
          %p141 = pneg %p77
        $region14: #{tpu_custom_call.1} parent=11 // pred_check_branch
          %143 = sbr.rel (%p141) target = $region16
        $region15: #{tpu_custom_call.1} parent=11 // pred_region
          %s145 = ssub.s32 256, 256
          %146 = vsyncadd [#allocation6], %s145
          %s147 = sshll.u32 [#allocation5], 4
          %s148 = int_to_ptr.vmem [resolvable:$true] %s147
          %153 = dma.hbm_to_vmem [thread:$0]  %s1, 256, %s148, [#allocation6], 64, 64, 4
        $region16: #{tpu_custom_call.1} parent=11 // pred_fallthru
          _
        // Predicated region
        $region17: #{tpu_custom_call.1} parent=11 // pred_check
          %p154 = pneg %p98
        $region18: #{tpu_custom_call.1} parent=11 // pred_check_branch
          %156 = sbr.rel (%p154) target = $region20
        $region19: #{tpu_custom_call.1} parent=11 // pred_region
          _
        $region20: #{tpu_custom_call.1} parent=11 // pred_fallthru
          _
      $region12: #{tpu_custom_call.1} parent=5 // pred_fallthru
        _
      %p157 = scmp.lt.s32.totalorder %s16, 2
      // Predicated region
      $region21: #{tpu_custom_call.1} parent=5 // pred_check
        %p158 = pneg %p157
      $region22: #{tpu_custom_call.1} parent=5 // pred_check_branch
        %160 = sbr.rel (%p158) target = $region24
      $region23: #{tpu_custom_call.1} parent=5 // pred_region
        // Predicated region
        $region25: #{tpu_custom_call.1} parent=23 // pred_check
          %p161 = pneg %p50
        $region26: #{tpu_custom_call.1} parent=23 // pred_check_branch
          %163 = sbr.rel (%p161) target = $region28
        $region27: #{tpu_custom_call.1} parent=23 // pred_region
          %s164 = sand.u32 %s40, 1
          %s165 = scalar_lea.sflag [#allocation3], %s164
          %s166 = sand.u32 %s40, 1
          %s167 = smul.addr %s166, 8
          %s168 = scalar_lea.vmem [#allocation2], %s167
          %s170 = ssub.s32 128, 128
          %171 = vsyncadd %s165, %s170
          %s172 = sadd.s32 %s24, %s23
          %s173 = smul.addr %s172, 128
          %s174 = scalar_lea.hbm %s0, %s173
          %s176 = sshll.u32 %s168, 4
          %s177 = int_to_ptr.vmem [resolvable:$true] %s176
          %179 = dma.hbm_to_vmem [thread:$0]  %s174, 128, %s177, %s165
        $region28: #{tpu_custom_call.1} parent=23 // pred_fallthru
          _
      $region24: #{tpu_custom_call.1} parent=5 // pred_fallthru
        _
      %p180 = scmp.le.s32.totalorder 1, %s16
      %p181 = scmp.lt.s32.totalorder %s16, 3
      %p182 = pnand %p180, %p181
      %p183 = pneg %p182
      // Predicated region
      $region29: #{tpu_custom_call.1} parent=5 // pred_check
        _
      $region30: #{tpu_custom_call.1} parent=5 // pred_check_branch
        %185 = sbr.rel (%p182) target = $region32
      $region31: #{tpu_custom_call.1} parent=5 // pred_region
        %s186 = ssub.s32 %s16, 1
        %s187 = sand.u32 %s43, 1
        %s188 = scalar_lea.sflag [#allocation3], %s187
        %s189 = sand.u32 %s43, 1
        %s190 = smul.addr %s189, 8
        %s191 = scalar_lea.vmem [#allocation2], %s190
        // Predicated region
        $region33: #{tpu_custom_call.1} parent=31 // pred_check
          %p192 = pneg %p56
        $region34: #{tpu_custom_call.1} parent=31 // pred_check_branch
          %194 = sbr.rel (%p192) target = $region36
        $region35: #{tpu_custom_call.1} parent=31 // pred_region
          %195 = dma.done %s188, 128
        $region36: #{tpu_custom_call.1} parent=31 // pred_fallthru
          _
        // Predicated region
        $region37: #{tpu_custom_call.1} parent=31 // pred_check
          %p196 = pneg %p77
        $region38: #{tpu_custom_call.1} parent=31 // pred_check_branch
          %198 = sbr.rel (%p196) target = $region40
        $region39: #{tpu_custom_call.1} parent=31 // pred_region
          %199 = dma.done [#allocation6], 256
        $region40: #{tpu_custom_call.1} parent=31 // pred_fallthru
          _
        %s200 = sand.u32 %s43, 1
        %s201 = scalar_lea.sflag [#allocation3], %s200
        %s202 = sand.u32 %s43, 1
        %s203 = smul.addr %s202, 8
        %s204 = scalar_lea.vmem [#allocation2], %s203
        %p205 = pneg %p56
        %p206 = pneg %p53
        %p207 = pneg %p77
        %p208 = pneg %p74
        %p209 = pneg %p98
        %p210 = pneg %p95
        %p211 = pneg %p126
        %p212 = pneg %p123
        %s213 = sand.u32 %s113, 1
        %s214 = scalar_lea.sflag [#allocation4], %s213
        %s215 = sand.u32 %s113, 1
        %s216 = smul.addr %s215, 4
        %s217 = scalar_lea.vmem [#allocation7], %s216
        %v219 = vld [vmem:[%s191] sm:$0xff]
        %v220 = vpack.c.bf16 %v219, %v219
        %v221 = vld [vmem:[#allocation5] sm:$0xf]
        %v222 = vld [vmem:[#allocation5 + $0x4] sm:$0xf]
        %v223 = vld [vmem:[#allocation5 + $0x8] sm:$0xf]
        %v224 = vld [vmem:[#allocation5 + $0xc] sm:$0xf]
        %v225 = vld [vmem:[%s2] sm:$0x1]
        %v227 = vlaneseq
        %v228 = vshrl.u32 %v227, 7
        %v229 = vsub.s32 0, %v228
        %v230 = vrot.slane %v225, %v229
        %v236 = vunpack.c.l.b16 %v221
        %v237 = vunpack.c.l.b16 %v222
        %v238 = vunpack.c.l.b16 %v223
        %v239 = vunpack.c.l.b16 %v224
        %v240 = vpack.c.b16 %v237, %v236
        %v241 = vpack.c.b16 %v239, %v238
        %vm244 = vcmask 261120
        %v246 = vsel %vm244, %v220, 0
        %248 = vmatprep.subr.bf16.mxu0 0
        %249 = vmatpush1.bf16.msra.mxu0 %v240
        %250 = vmatprep.subr.bf16.mxu0 0
        %251 = vmatpush1.bf16.msra.mxu0 %v241
        %252 = vmatprep.subr.bf16.mxu0 0
        %253 = vmatpush1.bf16.msra.mxu0 0
        %254 = vmatprep.subr.bf16.mxu0 0
        %255 = vmatpush1.bf16.msra.mxu0 0
        %256 = vmatprep.subr.bf16.mxu0 0
        %257 = vmatpush1.bf16.msra.mxu0 0
        %258 = vmatprep.subr.bf16.mxu0 0
        %259 = vmatpush1.bf16.msra.mxu0 0
        %260 = vmatprep.subr.bf16.mxu0 0
        %261 = vmatpush1.bf16.msra.mxu0 0
        %262 = vmatprep.subr.bf16.mxu0 0
        %263 = vmatpush1.bf16.msra.mxu0 0
        %264 = vmatprep.subr.bf16.mxu0 0
        %265 = vmatpush1.bf16.msra.mxu0 0
        %266 = vmatprep.subr.bf16.mxu0 0
        %267 = vmatpush1.bf16.msra.mxu0 0
        %268 = vmatprep.subr.bf16.mxu0 0
        %269 = vmatpush1.bf16.msra.mxu0 0
        %270 = vmatprep.subr.bf16.mxu0 0
        %271 = vmatpush1.bf16.msra.mxu0 0
        %272 = vmatprep.subr.bf16.mxu0 0
        %273 = vmatpush1.bf16.msra.mxu0 0
        %274 = vmatprep.subr.bf16.mxu0 0
        %275 = vmatpush1.bf16.msra.mxu0 0
        %276 = vmatprep.subr.bf16.mxu0 0
        %277 = vmatpush1.bf16.msra.mxu0 0
        %278 = vmatprep.subr.bf16.mxu0 0
        %279 = vmatpush1.bf16.msra.mxu0 0
        %280 = vmatprep.mubr.bf16.mxu0 0
        %281 = vmatmul.mubr.bf16.gmra.mrb[0].mxu0 %v246
        %v282 = vpop.f32.mrb[0].mxu0
        %v283 = vadd.f32 %v230, %v282
        %v284 = vpop.f32.mrb[0].mxu0
        %v285 = vpop.f32.mrb[0].mxu0
        %v286 = vpop.f32.mrb[0].mxu0
        %287 = vdwg.mxu0
        %v288 = vpack.c.bf16 %v283, %v283
        %vm289 = vcmask 781312
        %290 = vst.msk [vmem:[%s217] sm:$0xf] %vm289, %v288
        %s291 = sand.u32 %s113, 1
        %s292 = scalar_lea.sflag [#allocation4], %s291
        %s293 = sand.u32 %s113, 1
        %s294 = smul.addr %s293, 4
        %s295 = scalar_lea.vmem [#allocation7], %s294
        // Predicated region
        $region41: #{tpu_custom_call.1} parent=31 // pred_check
          %p296 = pneg %p123
        $region42: #{tpu_custom_call.1} parent=31 // pred_check_branch
          %298 = sbr.rel (%p296) target = $region44
        $region43: #{tpu_custom_call.1} parent=31 // pred_region
          %s300 = ssub.s32 64, 64
          %301 = vsyncadd %s292, %s300
          %s302 = sadd.s32 %s26, %s25
          %s303 = smul.addr %s302, 64
          %s304 = scalar_lea.hbm %s3, %s303
          %s306 = sshll.u32 %s295, 4
          %s307 = int_to_ptr.vmem [resolvable:$true] %s306
          %309 = dma.vmem_to_hbm [thread:$0]  %s307, 64, %s304, %s292
        $region44: #{tpu_custom_call.1} parent=31 // pred_fallthru
          _
      $region32: #{tpu_custom_call.1} parent=5 // pred_fallthru
        _
      %p310 = scmp.le.s32.totalorder 2, %s16
      // Predicated region
      $region45: #{tpu_custom_call.1} parent=5 // pred_check
        %p311 = pneg %p310
      $region46: #{tpu_custom_call.1} parent=5 // pred_check_branch
        %313 = sbr.rel (%p311) target = $region48
      $region47: #{tpu_custom_call.1} parent=5 // pred_region
        %s314 = ssub.s32 %s16, 2
        // Predicated region
        $region49: #{tpu_custom_call.1} parent=47 // pred_check
          %p315 = pneg %p129
        $region50: #{tpu_custom_call.1} parent=47 // pred_check_branch
          %317 = sbr.rel (%p315) target = $region52
        $region51: #{tpu_custom_call.1} parent=47 // pred_region
          %s318 = sand.u32 %s114, 1
          %s319 = scalar_lea.sflag [#allocation4], %s318
          %s320 = sand.u32 %s114, 1
          %s321 = smul.addr %s320, 4
          %s322 = scalar_lea.vmem [#allocation7], %s321
          %323 = dma.done %s319, 64
        $region52: #{tpu_custom_call.1} parent=47 // pred_fallthru
          _
      $region48: #{tpu_custom_call.1} parent=5 // pred_fallthru
        _
    $region6: #{tpu_custom_call.1} parent=1 // loop_footer
      %s20 = sadd.s32 1, %s16
    $region7: #{tpu_custom_call.1} parent=1 // loop_footer_branch
      %15 = sbr.rel target = $region3
    $region8: #{tpu_custom_call.1} parent=1 // loop_exit
      _
    %324 = vsyncpa [#allocation3], 1
    %s325 = scalar_lea.sflag [#allocation3], 1
    %326 = vsyncpa %s325, 1
    %327 = vsyncpa [#allocation6], 1
    %328 = vsyncpa [#allocation4], 1
    %s329 = scalar_lea.sflag [#allocation4], 1
    %330 = vsyncpa %s329, 1

</llo_original>
